<compile_context>
chip_gen: v6e
topology: v6e:2x2x1
jax: 0.10.0
libtpu: 0.0.40
codegen_flags: <defaults>
</compile_context>

<pallas_src>
import functools

import jax
import jax.numpy as jnp
import numpy as np
from jax.experimental import pallas as pl
from jax.experimental.pallas import tpu as pltpu

_LANES = 128
_SUBLANES = 8
_NEG = -1e30  # lane-pad value: exp(pad - max) == 0, so no in-kernel vocab mask needed


def _round_up(x, m):
    return ((x + m - 1) // m) * m


def pad_embedding_table(embedding_table):
    """One-time parameter preprocessing: pad the vocab (lane) axis to a 128 multiple.

    Kept OUT of the per-forward path so the O(V^2) pad is not paid every call.
    Pad lanes are filled with -1e30 so the kernel needs no vocab mask.
    """
    V = embedding_table.shape[1]
    Vp = _round_up(V, _LANES)
    emb = embedding_table.astype(jnp.float32)
    if Vp != V:
        emb = jnp.pad(emb, ((0, 0), (0, Vp - V)), constant_values=_NEG)
    return emb


def _table_budget_bytes():
    """How large a table we are willing to hold wholesale in VMEM."""
    try:
        vmem_bytes = int(pltpu.get_tpu_info().vmem_capacity_bytes)
    except Exception:
        vmem_bytes = 64 << 20  # conservative (v7x-class)
    if vmem_bytes <= (64 << 20):
        return 24 << 20        # v7x: 64 MiB physical VMEM -> lower cutoff
    return 48 << 20            # v5e / v6e: 128 MiB physical VMEM


def _mean_ce(logits, tgt_col, col, valid_row, n_valid):
    """Mean cross-entropy over the n_valid rows; pad lanes already hold -1e30."""
    m = jnp.max(logits, axis=-1, keepdims=True)
    lse = jnp.log(jnp.sum(jnp.exp(logits - m), axis=-1, keepdims=True)) + m
    tgt_logit = jnp.sum(jnp.where(col == tgt_col, logits, 0.0), axis=-1, keepdims=True)
    per_tok = lse - tgt_logit
    if valid_row is not None:
        per_tok = jnp.where(valid_row, per_tok, 0.0)
    return jnp.sum(per_tok) * (1.0 / n_valid)


def _make_vmem_table_kernel(N, Np, V, Vp):
    """Small-vocab path: whole table in VMEM (bulk DMA via BlockSpec), in-VMEM row gather."""

    def kernel(idx_ref, tgt_ref, emb_ref, logits_ref, loss_ref):
        # ---- 1) Row gather: sublane dynamic-slice copies out of the VMEM-resident table ----
        if Np <= 64:
            for i in range(Np):  # short: unroll for scheduler visibility
                logits_ref[pl.ds(i, 1), :] = emb_ref[pl.ds(idx_ref[i], 1), :]
        else:
            @pl.loop(0, Np)
            def _(i):
                logits_ref[pl.ds(i, 1), :] = emb_ref[pl.ds(idx_ref[i], 1), :]

        # ---- 2) Mean cross-entropy (vectorized target pick from the VMEM target column) ----
        col = jax.lax.broadcasted_iota(jnp.int32, (Np, Vp), 1)
        valid = None
        if Np > N:
            valid = jax.lax.broadcasted_iota(jnp.int32, (Np, 1), 0) < N
        loss_ref[0] = _mean_ce(logits_ref[...], tgt_ref[...], col, valid, N)

    return kernel


def _make_dma_gather_kernel(N, Np, V, Vp):
    """Large-vocab fallback: table stays in HBM, one row DMA per valid token."""

    def kernel(idx_ref, tgt_ref, emb_hbm, logits_ref, loss_ref, copy_sem):
        if Np > N:  # keep padded output rows defined (disjoint from DMA'd rows)
            logits_ref[pl.ds(N, Np - N), :] = jnp.zeros((Np - N, Vp), jnp.float32)

        # ---- 1) Start the row-gather DMAs (valid rows only) ----
        copies = [
            pltpu.make_async_copy(
                emb_hbm.at[pl.ds(idx_ref[i], 1)],   # (1, Vp) row in HBM
                logits_ref.at[pl.ds(i, 1)],         # (1, Vp) row of the output block
                copy_sem.at[i],
            )
            for i in range(N)
        ]
        for c in copies:
            c.start()

        # ---- 2) Independent work overlapped with the in-flight DMAs ----
        col = jax.lax.broadcasted_iota(jnp.int32, (Np, Vp), 1)
        tgt_col = tgt_ref[...]
        valid = None
        if Np > N:
            valid = jax.lax.broadcasted_iota(jnp.int32, (Np, 1), 0) < N

        for c in copies:
            c.wait()

        # ---- 3) Mean cross-entropy ----
        loss_ref[0] = _mean_ce(logits_ref[...], tgt_col, col, valid, N)

    return kernel


@functools.partial(jax.jit, static_argnames=("force_dma_gather",))
def _bigram_forward_impl(input_index, targets, emb_padded, *, force_dma_gather=False):
    """Equivalent of BigramLanguageModel.forward -> (logits.view(N, C), loss)."""
    B, T = input_index.shape
    V, Vp = emb_padded.shape         # rows are the true vocab; lanes are 128-padded
    N = B * T
    Np = _round_up(N, _SUBLANES)

    idx_flat = input_index.reshape(N).astype(jnp.int32)
    tgt_flat = targets.reshape(N).astype(jnp.int32)
    if Np != N:
        idx_flat = jnp.pad(idx_flat, (0, Np - N))
        tgt_flat = jnp.pad(tgt_flat, (0, Np - N))
    tgt_col = tgt_flat.reshape(Np, 1)

    table_bytes = V * Vp * 4
    logits_bytes = Np * Vp * 4
    use_vmem_table = (not force_dma_gather) and (table_bytes <= _table_budget_bytes())

    cost = pl.CostEstimate(
        flops=int(6 * N * Vp),
        transcendentals=int(N * Vp + N),
        bytes_accessed=int(table_bytes + logits_bytes + 2 * Np * 4 + 4),
    )
    needed_vmem = (table_bytes if use_vmem_table else 0) + 2 * logits_bytes + (4 << 20)
    vmem_limit = int(max(32 << 20, needed_vmem))

    if use_vmem_table:
        kernel = _make_vmem_table_kernel(N, Np, V, Vp)
        grid_spec = pltpu.PrefetchScalarGridSpec(
            num_scalar_prefetch=1,                              # token ids -> SMEM
            grid=(1,),
            in_specs=[
                pl.BlockSpec((Np, 1), lambda i, idx: (0, 0)),   # targets column (VMEM)
                pl.BlockSpec((V, Vp), lambda i, idx: (0, 0)),   # whole table, one bulk DMA
            ],
            out_specs=[
                pl.BlockSpec((Np, Vp), lambda i, idx: (0, 0)),  # lane-dense logits
                pl.BlockSpec(memory_space=pltpu.MemorySpace.SMEM),  # scalar loss
            ],
        )
    else:
        kernel = _make_dma_gather_kernel(N, Np, V, Vp)
        grid_spec = pltpu.PrefetchScalarGridSpec(
            num_scalar_prefetch=1,
            grid=(1,),
            in_specs=[
                pl.BlockSpec((Np, 1), lambda i, idx: (0, 0)),   # targets column (VMEM)
                pl.BlockSpec(memory_space=pl.ANY),              # table stays in HBM
            ],
            out_specs=[
                pl.BlockSpec((Np, Vp), lambda i, idx: (0, 0)),
                pl.BlockSpec(memory_space=pltpu.MemorySpace.SMEM),
            ],
            scratch_shapes=[pltpu.SemaphoreType.DMA((N,))],
        )

    logits_pad, loss = pl.pallas_call(
        kernel,
        grid_spec=grid_spec,
        out_shape=[
            jax.ShapeDtypeStruct((Np, Vp), jnp.float32),
            jax.ShapeDtypeStruct((1,), jnp.float32),
        ],
        compiler_params=pltpu.CompilerParams(
            dimension_semantics=("arbitrary",),
            vmem_limit_bytes=vmem_limit,
        ),
        cost_estimate=cost,
    )(idx_flat, tgt_col, emb_padded)

    # Slice away lane / row padding: matches input_logits.view(N, C).
    return logits_pad[:N, :V], loss[0]


class BigramLanguageModel:
    """JAX/Pallas counterpart of the PyTorch BigramLanguageModel (forward only)."""

    def __init__(self, vocabulary_size, key):
        self.vocabulary_size = vocabulary_size
        # nn.Embedding default init: N(0, 1)
        self.embedding_table = jax.random.normal(
            key, (vocabulary_size, vocabulary_size), dtype=jnp.float32)
        # One-time lane padding of the parameter (kept out of the per-step path).
        self._emb_padded = pad_embedding_table(self.embedding_table)

    def forward(self, input_index, targets, force_dma_gather=False):
        return _bigram_forward_impl(
            input_index, targets, self._emb_padded,
            force_dma_gather=force_dma_gather)


def _reference_forward(input_index, targets, embedding_table):
    """Pure-JAX reference matching the PyTorch semantics."""
    logits = embedding_table[input_index]            # (B, T, V)
    B, T, V = logits.shape
    logits = logits.reshape(B * T, V)
    tgt = targets.reshape(B * T)
    lse = jax.nn.logsumexp(logits, axis=-1)
    tgt_logit = jnp.take_along_axis(logits, tgt[:, None], axis=-1)[:, 0]
    loss = jnp.mean(lse - tgt_logit)
    return logits, loss


if __name__ == "__main__":
    key = jax.random.PRNGKey(0)

    vocabulary_size = 64   # len(chars) for a synthetic charset
    batch = 2              # B
    block_size = 8         # T (matches block_size in the source snippet)

    k_emb, k_idx, k_tgt = jax.random.split(key, 3)

    model = BigramLanguageModel(vocabulary_size, k_emb)

    input_index = jax.random.randint(
        k_idx, (batch, block_size), 0, vocabulary_size, dtype=jnp.int32)
    targets = jax.random.randint(
        k_tgt, (batch, block_size), 0, vocabulary_size, dtype=jnp.int32)

    # Fast path: table bulk-DMA'd into VMEM, in-VMEM row gather.
    logits, loss = model.forward(input_index, targets)
    jax.block_until_ready((logits, loss))

    ref_logits, ref_loss = _reference_forward(input_index, targets, model.embedding_table)
    assert logits.shape == (batch * block_size, vocabulary_size)
    assert np.allclose(np.asarray(logits), np.asarray(ref_logits), atol=1e-5)
    assert np.allclose(float(loss), float(ref_loss), atol=1e-4)

    # Also exercise the large-vocab fallback (per-row HBM DMA gather) for coverage.
    logits2, loss2 = model.forward(input_index, targets, force_dma_gather=True)
    jax.block_until_ready((logits2, loss2))
    assert np.allclose(np.asarray(logits2), np.asarray(ref_logits), atol=1e-5)
    assert np.allclose(float(loss2), float(ref_loss), atol=1e-4)

    print("KERNEL_OK")
</pallas_src>

<mosaic_0001>
module attributes {stable_mosaic.version = 11 : i64} {
  func.func @kernel(%arg0: i32, %arg1: memref<16xi32, #tpu.memory_space<smem>>, %arg2: memref<16x1xi32, #tpu.memory_space<vmem>>, %arg3: memref<64x128xf32, #tpu.memory_space<vmem>>, %arg4: memref<16x128xf32, #tpu.memory_space<vmem>>, %arg5: memref<1xf32, #tpu.memory_space<smem>>) attributes {dimension_semantics = [#tpu.dimension_semantics<arbitrary>], iteration_bounds = array<i64: 1>, scalar_prefetch = 1 : i64, scratch_operands = 0 : i64, tpu.core_type = #tpu.core_type<tc>, window_params = [{pipeline_mode = #tpu.pipeline_mode<synchronous>, transform_indices = @transform_0, window_bounds = array<i64: 16, 1>}, {pipeline_mode = #tpu.pipeline_mode<synchronous>, transform_indices = @transform_1, window_bounds = array<i64: 64, 128>}, {pipeline_mode = #tpu.pipeline_mode<synchronous>, transform_indices = @transform_2, window_bounds = array<i64: 16, 128>}, {transform_indices = @transform_3, window_bounds = array<i64: 1>}]} {
    %c0 = arith.constant 0 : index
    %0 = memref.load %arg1[%c0] : memref<16xi32, #tpu.memory_space<smem>>
    %1 = arith.index_cast %0 : i32 to index
    %c0_0 = arith.constant 0 : index
    %2 = vector.load %arg3[%1, %c0_0] : memref<64x128xf32, #tpu.memory_space<vmem>>, vector<1x128xf32>
    %c0_1 = arith.constant 0 : index
    %c0_2 = arith.constant 0 : index
    %3 = vector.load %arg4[%c0_1, %c0_2] : memref<16x128xf32, #tpu.memory_space<vmem>>, vector<1x128xf32>
    tpu.vector_store %arg4[%c0_1, %c0_2], %2 {strides = array<i32>} : memref<16x128xf32, #tpu.memory_space<vmem>>, vector<1x128xf32>,
    %c1 = arith.constant 1 : index
    %4 = memref.load %arg1[%c1] : memref<16xi32, #tpu.memory_space<smem>>
    %5 = arith.index_cast %4 : i32 to index
    %c0_3 = arith.constant 0 : index
    %6 = vector.load %arg3[%5, %c0_3] : memref<64x128xf32, #tpu.memory_space<vmem>>, vector<1x128xf32>
    %c1_4 = arith.constant 1 : index
    %c0_5 = arith.constant 0 : index
    %7 = vector.load %arg4[%c1_4, %c0_5] : memref<16x128xf32, #tpu.memory_space<vmem>>, vector<1x128xf32>
    tpu.vector_store %arg4[%c1_4, %c0_5], %6 {strides = array<i32>} : memref<16x128xf32, #tpu.memory_space<vmem>>, vector<1x128xf32>,
    %c2 = arith.constant 2 : index
    %8 = memref.load %arg1[%c2] : memref<16xi32, #tpu.memory_space<smem>>
    %9 = arith.index_cast %8 : i32 to index
    %c0_6 = arith.constant 0 : index
    %10 = vector.load %arg3[%9, %c0_6] : memref<64x128xf32, #tpu.memory_space<vmem>>, vector<1x128xf32>
    %c2_7 = arith.constant 2 : index
    %c0_8 = arith.constant 0 : index
    %11 = vector.load %arg4[%c2_7, %c0_8] : memref<16x128xf32, #tpu.memory_space<vmem>>, vector<1x128xf32>
    tpu.vector_store %arg4[%c2_7, %c0_8], %10 {strides = array<i32>} : memref<16x128xf32, #tpu.memory_space<vmem>>, vector<1x128xf32>,
    %c3 = arith.constant 3 : index
    %12 = memref.load %arg1[%c3] : memref<16xi32, #tpu.memory_space<smem>>
    %13 = arith.index_cast %12 : i32 to index
    %c0_9 = arith.constant 0 : index
    %14 = vector.load %arg3[%13, %c0_9] : memref<64x128xf32, #tpu.memory_space<vmem>>, vector<1x128xf32>
    %c3_10 = arith.constant 3 : index
    %c0_11 = arith.constant 0 : index
    %15 = vector.load %arg4[%c3_10, %c0_11] : memref<16x128xf32, #tpu.memory_space<vmem>>, vector<1x128xf32>
    tpu.vector_store %arg4[%c3_10, %c0_11], %14 {strides = array<i32>} : memref<16x128xf32, #tpu.memory_space<vmem>>, vector<1x128xf32>,
    %c4 = arith.constant 4 : index
    %16 = memref.load %arg1[%c4] : memref<16xi32, #tpu.memory_space<smem>>
    %17 = arith.index_cast %16 : i32 to index
    %c0_12 = arith.constant 0 : index
    %18 = vector.load %arg3[%17, %c0_12] : memref<64x128xf32, #tpu.memory_space<vmem>>, vector<1x128xf32>
    %c4_13 = arith.constant 4 : index
    %c0_14 = arith.constant 0 : index
    %19 = vector.load %arg4[%c4_13, %c0_14] : memref<16x128xf32, #tpu.memory_space<vmem>>, vector<1x128xf32>
    tpu.vector_store %arg4[%c4_13, %c0_14], %18 {strides = array<i32>} : memref<16x128xf32, #tpu.memory_space<vmem>>, vector<1x128xf32>,
    %c5 = arith.constant 5 : index
    %20 = memref.load %arg1[%c5] : memref<16xi32, #tpu.memory_space<smem>>
    %21 = arith.index_cast %20 : i32 to index
    %c0_15 = arith.constant 0 : index
    %22 = vector.load %arg3[%21, %c0_15] : memref<64x128xf32, #tpu.memory_space<vmem>>, vector<1x128xf32>
    %c5_16 = arith.constant 5 : index
    %c0_17 = arith.constant 0 : index
    %23 = vector.load %arg4[%c5_16, %c0_17] : memref<16x128xf32, #tpu.memory_space<vmem>>, vector<1x128xf32>
    tpu.vector_store %arg4[%c5_16, %c0_17], %22 {strides = array<i32>} : memref<16x128xf32, #tpu.memory_space<vmem>>, vector<1x128xf32>,
    %c6 = arith.constant 6 : index
    %24 = memref.load %arg1[%c6] : memref<16xi32, #tpu.memory_space<smem>>
    %25 = arith.index_cast %24 : i32 to index
    %c0_18 = arith.constant 0 : index
    %26 = vector.load %arg3[%25, %c0_18] : memref<64x128xf32, #tpu.memory_space<vmem>>, vector<1x128xf32>
    %c6_19 = arith.constant 6 : index
    %c0_20 = arith.constant 0 : index
    %27 = vector.load %arg4[%c6_19, %c0_20] : memref<16x128xf32, #tpu.memory_space<vmem>>, vector<1x128xf32>
    tpu.vector_store %arg4[%c6_19, %c0_20], %26 {strides = array<i32>} : memref<16x128xf32, #tpu.memory_space<vmem>>, vector<1x128xf32>,
    %c7 = arith.constant 7 : index
    %28 = memref.load %arg1[%c7] : memref<16xi32, #tpu.memory_space<smem>>
    %29 = arith.index_cast %28 : i32 to index
    %c0_21 = arith.constant 0 : index
    %30 = vector.load %arg3[%29, %c0_21] : memref<64x128xf32, #tpu.memory_space<vmem>>, vector<1x128xf32>
    %c7_22 = arith.constant 7 : index
    %c0_23 = arith.constant 0 : index
    %31 = vector.load %arg4[%c7_22, %c0_23] : memref<16x128xf32, #tpu.memory_space<vmem>>, vector<1x128xf32>
    tpu.vector_store %arg4[%c7_22, %c0_23], %30 {strides = array<i32>} : memref<16x128xf32, #tpu.memory_space<vmem>>, vector<1x128xf32>,
    %c8 = arith.constant 8 : index
    %32 = memref.load %arg1[%c8] : memref<16xi32, #tpu.memory_space<smem>>
    %33 = arith.index_cast %32 : i32 to index
    %c0_24 = arith.constant 0 : index
    %34 = vector.load %arg3[%33, %c0_24] : memref<64x128xf32, #tpu.memory_space<vmem>>, vector<1x128xf32>
    %c8_25 = arith.constant 8 : index
    %c0_26 = arith.constant 0 : index
    %35 = vector.load %arg4[%c8_25, %c0_26] : memref<16x128xf32, #tpu.memory_space<vmem>>, vector<1x128xf32>
    tpu.vector_store %arg4[%c8_25, %c0_26], %34 {strides = array<i32>} : memref<16x128xf32, #tpu.memory_space<vmem>>, vector<1x128xf32>,
    %c9 = arith.constant 9 : index
    %36 = memref.load %arg1[%c9] : memref<16xi32, #tpu.memory_space<smem>>
    %37 = arith.index_cast %36 : i32 to index
    %c0_27 = arith.constant 0 : index
    %38 = vector.load %arg3[%37, %c0_27] : memref<64x128xf32, #tpu.memory_space<vmem>>, vector<1x128xf32>
    %c9_28 = arith.constant 9 : index
    %c0_29 = arith.constant 0 : index
    %39 = vector.load %arg4[%c9_28, %c0_29] : memref<16x128xf32, #tpu.memory_space<vmem>>, vector<1x128xf32>
    tpu.vector_store %arg4[%c9_28, %c0_29], %38 {strides = array<i32>} : memref<16x128xf32, #tpu.memory_space<vmem>>, vector<1x128xf32>,
    %c10 = arith.constant 10 : index
    %40 = memref.load %arg1[%c10] : memref<16xi32, #tpu.memory_space<smem>>
    %41 = arith.index_cast %40 : i32 to index
    %c0_30 = arith.constant 0 : index
    %42 = vector.load %arg3[%41, %c0_30] : memref<64x128xf32, #tpu.memory_space<vmem>>, vector<1x128xf32>
    %c10_31 = arith.constant 10 : index
    %c0_32 = arith.constant 0 : index
    %43 = vector.load %arg4[%c10_31, %c0_32] : memref<16x128xf32, #tpu.memory_space<vmem>>, vector<1x128xf32>
    tpu.vector_store %arg4[%c10_31, %c0_32], %42 {strides = array<i32>} : memref<16x128xf32, #tpu.memory_space<vmem>>, vector<1x128xf32>,
    %c11 = arith.constant 11 : index
    %44 = memref.load %arg1[%c11] : memref<16xi32, #tpu.memory_space<smem>>
    %45 = arith.index_cast %44 : i32 to index
    %c0_33 = arith.constant 0 : index
    %46 = vector.load %arg3[%45, %c0_33] : memref<64x128xf32, #tpu.memory_space<vmem>>, vector<1x128xf32>
    %c11_34 = arith.constant 11 : index
    %c0_35 = arith.constant 0 : index
    %47 = vector.load %arg4[%c11_34, %c0_35] : memref<16x128xf32, #tpu.memory_space<vmem>>, vector<1x128xf32>
    tpu.vector_store %arg4[%c11_34, %c0_35], %46 {strides = array<i32>} : memref<16x128xf32, #tpu.memory_space<vmem>>, vector<1x128xf32>,
    %c12 = arith.constant 12 : index
    %48 = memref.load %arg1[%c12] : memref<16xi32, #tpu.memory_space<smem>>
    %49 = arith.index_cast %48 : i32 to index
    %c0_36 = arith.constant 0 : index
    %50 = vector.load %arg3[%49, %c0_36] : memref<64x128xf32, #tpu.memory_space<vmem>>, vector<1x128xf32>
    %c12_37 = arith.constant 12 : index
    %c0_38 = arith.constant 0 : index
    %51 = vector.load %arg4[%c12_37, %c0_38] : memref<16x128xf32, #tpu.memory_space<vmem>>, vector<1x128xf32>
    tpu.vector_store %arg4[%c12_37, %c0_38], %50 {strides = array<i32>} : memref<16x128xf32, #tpu.memory_space<vmem>>, vector<1x128xf32>,
    %c13 = arith.constant 13 : index
    %52 = memref.load %arg1[%c13] : memref<16xi32, #tpu.memory_space<smem>>
    %53 = arith.index_cast %52 : i32 to index
    %c0_39 = arith.constant 0 : index
    %54 = vector.load %arg3[%53, %c0_39] : memref<64x128xf32, #tpu.memory_space<vmem>>, vector<1x128xf32>
    %c13_40 = arith.constant 13 : index
    %c0_41 = arith.constant 0 : index
    %55 = vector.load %arg4[%c13_40, %c0_41] : memref<16x128xf32, #tpu.memory_space<vmem>>, vector<1x128xf32>
    tpu.vector_store %arg4[%c13_40, %c0_41], %54 {strides = array<i32>} : memref<16x128xf32, #tpu.memory_space<vmem>>, vector<1x128xf32>,
    %c14 = arith.constant 14 : index
    %56 = memref.load %arg1[%c14] : memref<16xi32, #tpu.memory_space<smem>>
    %57 = arith.index_cast %56 : i32 to index
    %c0_42 = arith.constant 0 : index
    %58 = vector.load %arg3[%57, %c0_42] : memref<64x128xf32, #tpu.memory_space<vmem>>, vector<1x128xf32>
    %c14_43 = arith.constant 14 : index
    %c0_44 = arith.constant 0 : index
    %59 = vector.load %arg4[%c14_43, %c0_44] : memref<16x128xf32, #tpu.memory_space<vmem>>, vector<1x128xf32>
    tpu.vector_store %arg4[%c14_43, %c0_44], %58 {strides = array<i32>} : memref<16x128xf32, #tpu.memory_space<vmem>>, vector<1x128xf32>,
    %c15 = arith.constant 15 : index
    %60 = memref.load %arg1[%c15] : memref<16xi32, #tpu.memory_space<smem>>
    %61 = arith.index_cast %60 : i32 to index
    %c0_45 = arith.constant 0 : index
    %62 = vector.load %arg3[%61, %c0_45] : memref<64x128xf32, #tpu.memory_space<vmem>>, vector<1x128xf32>
    %c15_46 = arith.constant 15 : index
    %c0_47 = arith.constant 0 : index
    %63 = vector.load %arg4[%c15_46, %c0_47] : memref<16x128xf32, #tpu.memory_space<vmem>>, vector<1x128xf32>
    tpu.vector_store %arg4[%c15_46, %c0_47], %62 {strides = array<i32>} : memref<16x128xf32, #tpu.memory_space<vmem>>, vector<1x128xf32>,
    %64 = tpu.iota {dimensions = array<i32: 1>} : vector<16x128xi32>
    %c0_48 = arith.constant 0 : index
    %c0_49 = arith.constant 0 : index
    %65 = vector.load %arg4[%c0_48, %c0_49] : memref<16x128xf32, #tpu.memory_space<vmem>>, vector<16x128xf32>
    %c0_50 = arith.constant 0 : index
    %c0_51 = arith.constant 0 : index
    %66 = vector.load %arg2[%c0_50, %c0_51] : memref<16x1xi32, #tpu.memory_space<vmem>>, vector<16x1xi32>
    %cst = arith.constant dense<0xFF800000> : vector<16xf32>
    %67 = vector.multi_reduction <maximumf>, %65, %cst [1] : vector<16x128xf32> to vector<16xf32>
    %68 = vector.shape_cast %67 : vector<16xf32> to vector<16x1xf32>
    %69 = vector.broadcast %68 : vector<16x1xf32> to vector<16x128xf32>
    %70 = arith.subf %65, %69 : vector<16x128xf32>
    %71 = math.exp %70 : vector<16x128xf32>
    %cst_52 = arith.constant dense<0.000000e+00> : vector<16xf32>
    %72 = vector.multi_reduction <add>, %71, %cst_52 [1] : vector<16x128xf32> to vector<16xf32>
    %73 = vector.shape_cast %72 : vector<16xf32> to vector<16x1xf32>
    %74 = math.log %73 : vector<16x1xf32>
    %75 = arith.addf %74, %68 : vector<16x1xf32>
    %76 = vector.broadcast %66 : vector<16x1xi32> to vector<16x128xi32>
    %77 = arith.cmpi eq, %64, %76 : vector<16x128xi32>
    %cst_53 = arith.constant 0.000000e+00 : f32
    %78 = vector.broadcast %cst_53 : f32 to vector<16x128xf32>
    %79 = arith.select %77, %65, %78 : vector<16x128xi1>, vector<16x128xf32>
    %cst_54 = arith.constant dense<0.000000e+00> : vector<16xf32>
    %80 = vector.multi_reduction <add>, %79, %cst_54 [1] : vector<16x128xf32> to vector<16xf32>
    %81 = vector.shape_cast %80 : vector<16xf32> to vector<16x1xf32>
    %82 = arith.subf %75, %81 : vector<16x1xf32>
    %83 = vector.shape_cast %82 : vector<16x1xf32> to vector<1x16x1xf32>
    %cst_55 = arith.constant dense<0.000000e+00> : vector<1xf32>
    %84 = vector.multi_reduction <add>, %83, %cst_55 [1, 2] : vector<1x16x1xf32> to vector<1xf32>
    %85 = vector.shape_cast %84 : vector<1xf32> to vector<1x1x1xf32>
    %86 = vector.extract %85[0, 0, 0] : f32 from vector<1x1x1xf32>
    %cst_56 = arith.constant 6.250000e-02 : f32
    %87 = arith.mulf %86, %cst_56 : f32
    %c0_57 = arith.constant 0 : index
    %88 = memref.load %arg5[%c0_57] : memref<1xf32, #tpu.memory_space<smem>>
    memref.store %87, %arg5[%c0_57] : memref<1xf32, #tpu.memory_space<smem>>
    return
  }
  func.func @transform_0(%arg0: i32, %arg1: memref<16xi32, #tpu.memory_space<smem>>) -> (i32, i32) {
    %c0_i32 = arith.constant 0 : i32
    %c0_i32_0 = arith.constant 0 : i32
    %c0_i32_1 = arith.constant 0 : i32
    return %c0_i32, %c0_i32_0 : i32, i32
  }
  func.func @transform_1(%arg0: i32, %arg1: memref<16xi32, #tpu.memory_space<smem>>) -> (i32, i32) {
    %c0_i32 = arith.constant 0 : i32
    %c0_i32_0 = arith.constant 0 : i32
    %c0_i32_1 = arith.constant 0 : i32
    return %c0_i32, %c0_i32_0 : i32, i32
  }
  func.func @transform_2(%arg0: i32, %arg1: memref<16xi32, #tpu.memory_space<smem>>) -> (i32, i32) {
    %c0_i32 = arith.constant 0 : i32
    %c0_i32_0 = arith.constant 0 : i32
    %c0_i32_1 = arith.constant 0 : i32
    return %c0_i32, %c0_i32_0 : i32, i32
  }
  func.func @transform_3(%arg0: i32, %arg1: memref<16xi32, #tpu.memory_space<smem>>) -> i32 {
    %c0_i32 = arith.constant 0 : i32
    %c0_i32_0 = arith.constant 0 : i32
    return %c0_i32 : i32
  }
}

</mosaic_0001>

<llo_original>
// kernel: _bigram_forward_impl.1
$region0: #{_bigram_forward_impl.1}
  #allocation0 [shape = 'u32[]', space=smem, size = 0x4, offset = 0x4, fixed_abs, tag = 'smem constant byte address 0x4 - core index']
  #allocation1 [shape = 'u32[144,128]{1,0:T(1,128)}', space=vmem, size = 0x12000, scoped, tag = 'internal scratch']
  #allocation2 [shape = 's32[1]{0}', space=sflag, size = 0x4, scoped, tag = 'scoped memory for _bigram_forward_impl.1']
  #allocation3 [shape = 'u8[512]{0}', space=smem, size = 0x200, scoped, tag = 'prefetched SMEM operand 0']
  %s0 = inlined_call_operand.vmem [shape: s32[16], index: 0, kind: input, shape index: {}]
  %s1 = inlined_call_operand.vmem [shape: s32[16,1], index: 1, kind: input, shape index: {}]
  %s2 = inlined_call_operand.hbm [shape: f32[64,128], index: 2, kind: input, shape index: {}]
  %s3 = inlined_call_operand.hbm [shape: f32[16,128], index: 3, kind: output, shape index: {0}]
  %s4 = inlined_call_operand.hbm [shape: f32[1], index: 4, kind: output, shape index: {1}]
  %5 = xla_tuple %s3, %s4
  %s6 = sld [smem:[#allocation0]]
  $region30: #{_bigram_forward_impl.1} parent=0
    _
  %s8 = ssub.s32 1, %s6
  %s9 = scalar_select 0, %s8, %s6
  %s10 = sshll.u32 %s0, 4
  %s11 = int_to_ptr.vmem [resolvable:$true] %s10
  %13 = dma.vmem_to_smem %s11, 16, [#allocation3], [#allocation2]
  %14 = dma.done [#allocation2], 16
  %15 = sfence
  $region1: #{_bigram_forward_impl.1} parent=0
    #allocation4 [shape = 'u8[32768]{0}', space=vmem, size = 0x8000, scoped, tag = 'input window, operand 2, single buffered']
    #allocation5 [shape = 's32[1]{0}', space=sflag, size = 0x4, scoped, tag = 'scoped memory for _bigram_forward_impl.1']
    #allocation6 [shape = 's32[1]{0}', space=sflag, size = 0x4, scoped, tag = 'scoped memory for _bigram_forward_impl.1']
    #allocation7 [shape = 's32[1]{0}', space=sflag, size = 0x4, scoped, tag = 'scoped memory for _bigram_forward_impl.1']
    #allocation8 [shape = 'u8[8192]{0}', space=vmem, size = 0x2000, scoped, tag = 'output window, operand 0, single buffered']
    #allocation9 [shape = 'u8[512]{0}', space=smem, size = 0x200, scoped, tag = 'output window, operand 1, single buffered']
    %16 = vsyncpa [#allocation5], 0
    %17 = vsyncpa [#allocation6], 0
    %18 = vsyncpa [#allocation7], 0
    // Predicated region
    $region2: #{_bigram_forward_impl.1} parent=1 // pred_check
      _
    $region3: #{_bigram_forward_impl.1} parent=1 // pred_check_branch
      %20 = sbr.rel (0) target = $region5
    $region4: #{_bigram_forward_impl.1} parent=1 // pred_region
      _
    $region5: #{_bigram_forward_impl.1} parent=1 // pred_fallthru
      _
    // Predicated region
    $region6: #{_bigram_forward_impl.1} parent=1 // pred_check
      _
    $region7: #{_bigram_forward_impl.1} parent=1 // pred_check_branch
      %22 = sbr.rel (0) target = $region9
    $region8: #{_bigram_forward_impl.1} parent=1 // pred_region
      %s24 = ssub.s32 1024, 1024
      %25 = vsyncadd [#allocation5], %s24
      %s26 = sshll.u32 [#allocation4], 4
      %s27 = int_to_ptr.vmem [resolvable:$true] %s26
      %32 = dma.hbm_to_vmem [thread:$0]  %s2, 1024, %s27, [#allocation5], 128, 128, 8
    $region9: #{_bigram_forward_impl.1} parent=1 // pred_fallthru
      _
    // Predicated region
    $region10: #{_bigram_forward_impl.1} parent=1 // pred_check
      _
    $region11: #{_bigram_forward_impl.1} parent=1 // pred_check_branch
      %34 = sbr.rel (0) target = $region13
    $region12: #{_bigram_forward_impl.1} parent=1 // pred_region
      %35 = dma.done [#allocation5], 1024
    $region13: #{_bigram_forward_impl.1} parent=1 // pred_fallthru
      _
    %s36 = sld [smem:[#allocation3]]
    %s37 = scalar_lea.vmem [#allocation4], %s36
    %v38 = vld [vmem:[%s37] sm:$0x1]
    %39 = vst [vmem:[#allocation8] sm:$0x1] %v38
    %s40 = sld [smem:[#allocation3 + $0x1]]
    %s41 = scalar_lea.vmem [#allocation4], %s40
    %v42 = vld [vmem:[%s41] sm:$0x1]
    %43 = vst [vmem:[#allocation8 + $0x1] sm:$0x1] %v42
    %s44 = sld [smem:[#allocation3 + $0x2]]
    %s45 = scalar_lea.vmem [#allocation4], %s44
    %v46 = vld [vmem:[%s45] sm:$0x1]
    %47 = vst [vmem:[#allocation8 + $0x2] sm:$0x1] %v46
    %s48 = sld [smem:[#allocation3 + $0x3]]
    %s49 = scalar_lea.vmem [#allocation4], %s48
    %v50 = vld [vmem:[%s49] sm:$0x1]
    %51 = vst [vmem:[#allocation8 + $0x3] sm:$0x1] %v50
    %s52 = sld [smem:[#allocation3 + $0x4]]
    %s53 = scalar_lea.vmem [#allocation4], %s52
    %v54 = vld [vmem:[%s53] sm:$0x1]
    %55 = vst [vmem:[#allocation8 + $0x4] sm:$0x1] %v54
    %s56 = sld [smem:[#allocation3 + $0x5]]
    %s57 = scalar_lea.vmem [#allocation4], %s56
    %v58 = vld [vmem:[%s57] sm:$0x1]
    %59 = vst [vmem:[#allocation8 + $0x5] sm:$0x1] %v58
    %s60 = sld [smem:[#allocation3 + $0x6]]
    %s61 = scalar_lea.vmem [#allocation4], %s60
    %v62 = vld [vmem:[%s61] sm:$0x1]
    %63 = vst [vmem:[#allocation8 + $0x6] sm:$0x1] %v62
    %s64 = sld [smem:[#allocation3 + $0x7]]
    %s65 = scalar_lea.vmem [#allocation4], %s64
    %v66 = vld [vmem:[%s65] sm:$0x1]
    %67 = vst [vmem:[#allocation8 + $0x7] sm:$0x1] %v66
    %s68 = sld [smem:[#allocation3 + $0x8]]
    %s69 = scalar_lea.vmem [#allocation4], %s68
    %v70 = vld [vmem:[%s69] sm:$0x1]
    %71 = vst [vmem:[#allocation8 + $0x8] sm:$0x1] %v70
    %s72 = sld [smem:[#allocation3 + $0x9]]
    %s73 = scalar_lea.vmem [#allocation4], %s72
    %v74 = vld [vmem:[%s73] sm:$0x1]
    %75 = vst [vmem:[#allocation8 + $0x9] sm:$0x1] %v74
    %s76 = sld [smem:[#allocation3 + $0xa]]
    %s77 = scalar_lea.vmem [#allocation4], %s76
    %v78 = vld [vmem:[%s77] sm:$0x1]
    %79 = vst [vmem:[#allocation8 + $0xa] sm:$0x1] %v78
    %s80 = sld [smem:[#allocation3 + $0xb]]
    %s81 = scalar_lea.vmem [#allocation4], %s80
    %v82 = vld [vmem:[%s81] sm:$0x1]
    %83 = vst [vmem:[#allocation8 + $0xb] sm:$0x1] %v82
    %s84 = sld [smem:[#allocation3 + $0xc]]
    %s85 = scalar_lea.vmem [#allocation4], %s84
    %v86 = vld [vmem:[%s85] sm:$0x1]
    %87 = vst [vmem:[#allocation8 + $0xc] sm:$0x1] %v86
    %s88 = sld [smem:[#allocation3 + $0xd]]
    %s89 = scalar_lea.vmem [#allocation4], %s88
    %v90 = vld [vmem:[%s89] sm:$0x1]
    %91 = vst [vmem:[#allocation8 + $0xd] sm:$0x1] %v90
    %s92 = sld [smem:[#allocation3 + $0xe]]
    %s93 = scalar_lea.vmem [#allocation4], %s92
    %v94 = vld [vmem:[%s93] sm:$0x1]
    %95 = vst [vmem:[#allocation8 + $0xe] sm:$0x1] %v94
    %s96 = sld [smem:[#allocation3 + $0xf]]
    %s97 = scalar_lea.vmem [#allocation4], %s96
    %v98 = vld [vmem:[%s97] sm:$0x1]
    %99 = vst [vmem:[#allocation8 + $0xf] sm:$0x1] %v98
    %v100 = vlaneseq
    %v101 = vand.u32 %v100, 127
    %v102 = vld [vmem:[#allocation8] sm:$0xff]
    %v103 = vld [vmem:[#allocation8 + $0x8] sm:$0xff]
    %v104 = vld [vmem:[%s1] sm:$0xff]
    %v105 = vld [vmem:[%s1 + $0x8] sm:$0xff]
    %106 = vmax.xlane.f32.xlu0 %v102
    %v107 = vpop.xlane.xlu0 %106
    %108 = vmax.xlane.f32.xlu0 %v103
    %v109 = vpop.xlane.xlu0 %108
    %v110 = vsub.f32 %v102, %v107
    %v111 = vsub.f32 %v103, %v109
    %v112 = vmul.f32 %v110, 1.442695
    %v113 = vpow.pop %v112
    %v114 = vmul.f32 %v111, 1.442695
    %v115 = vpow.pop %v114
    %116 = vadd.xlane.f32.xlu0 %v113
    %v117 = vpop.xlane.xlu0 %116
    %118 = vadd.xlane.f32.xlu0 %v115
    %v119 = vpop.xlane.xlu0 %118
    %v120 = vlog2.pop %v117
    %v121 = vmul.f32 %v120, 0.6931472
    %v122 = vlog2.pop %v119
    %v123 = vmul.f32 %v122, 0.6931472
    %v124 = vadd.f32 %v121, %v107
    %v125 = vadd.f32 %v123, %v109
    %126 = vset.pattern.permute.xlu0 0
    %127 = vperm.xlu0 %126, %v104
    %v128 = vpop.permute.xlu0 %127
    %129 = vset.pattern.permute.xlu0 0
    %130 = vperm.xlu0 %129, %v105
    %v131 = vpop.permute.xlu0 %130
    %vm132 = vcmp.eq.s32.totalorder %v101, %v128
    %vm133 = vcmp.eq.s32.totalorder %v101, %v131
    %v134 = vsel %vm132, %v102, 0.0
    %v135 = vsel %vm133, %v103, 0.0
    %136 = vadd.xlane.f32.xlu0 %v134
    %v137 = vpop.xlane.xlu0 %136
    %138 = vadd.xlane.f32.xlu0 %v135
    %v139 = vpop.xlane.xlu0 %138
    %v140 = vsub.f32 %v124, %v137
    %v141 = vsub.f32 %v125, %v139
    %vm142 = vcmask 7168
    %v143 = vsel %vm142, %v140, 0.0
    %v144 = vsel %vm142, %v141, 0.0
    %v145 = vadd.f32 %v143, %v144
    %146 = vadd.xlane.f32.xlu0 %v145
    %v147 = vpop.xlane.xlu0 %146
    %v148 = vrot.slane %v147, 4
    %v149 = vadd.f32 %v147, %v148
    %v150 = vrot.slane %v149, 2
    %v151 = vadd.f32 %v149, %v150
    %v152 = vrot.slane %v151, 1
    %v153 = vadd.f32 %v151, %v152
    %s154 = vtos %v153
    %s155 = smul.f32 %s154, 0.0625
    %s156 = scalar_lea.smem [#allocation9], 0
    %157 = sst [smem:[%s156]] %s155
    // Predicated region
    $region14: #{_bigram_forward_impl.1} parent=1 // pred_check
      _
    $region15: #{_bigram_forward_impl.1} parent=1 // pred_check_branch
      %159 = sbr.rel (0) target = $region17
    $region16: #{_bigram_forward_impl.1} parent=1 // pred_region
      %s161 = ssub.s32 256, 256
      %162 = vsyncadd [#allocation6], %s161
      %s163 = sshll.u32 [#allocation8], 4
      %s164 = int_to_ptr.vmem [resolvable:$true] %s163
      %169 = dma.vmem_to_hbm [thread:$0]  %s164, 256, %s3, [#allocation6], 128, 128, 8
    $region17: #{_bigram_forward_impl.1} parent=1 // pred_fallthru
      _
    // Predicated region
    $region18: #{_bigram_forward_impl.1} parent=1 // pred_check
      _
    $region19: #{_bigram_forward_impl.1} parent=1 // pred_check_branch
      %171 = sbr.rel (0) target = $region21
    $region20: #{_bigram_forward_impl.1} parent=1 // pred_region
      %s173 = ssub.s32 16, 16
      %174 = vsyncadd [#allocation7], %s173
      %177 = dma.smem_to_hbm [#allocation9], 16, %s4, [#allocation7]
    $region21: #{_bigram_forward_impl.1} parent=1 // pred_fallthru
      _
    // Predicated region
    $region22: #{_bigram_forward_impl.1} parent=1 // pred_check
      _
    $region23: #{_bigram_forward_impl.1} parent=1 // pred_check_branch
      %179 = sbr.rel (0) target = $region25
    $region24: #{_bigram_forward_impl.1} parent=1 // pred_region
      %180 = dma.done [#allocation6], 256
    $region25: #{_bigram_forward_impl.1} parent=1 // pred_fallthru
      _
    // Predicated region
    $region26: #{_bigram_forward_impl.1} parent=1 // pred_check
      _
    $region27: #{_bigram_forward_impl.1} parent=1 // pred_check_branch
      %182 = sbr.rel (0) target = $region29
    $region28: #{_bigram_forward_impl.1} parent=1 // pred_region
      %183 = dma.done [#allocation7], 16
    $region29: #{_bigram_forward_impl.1} parent=1 // pred_fallthru
      _
    %184 = sfence
    %185 = vsyncpa [#allocation5], 1
    %186 = vsyncpa [#allocation6], 1
    %187 = vsyncpa [#allocation7], 1

</llo_original>
